<compile_context>
chip_gen: v7x
topology: tpu7x:2x2x1
jax: 0.10.0
libtpu: 0.0.40
codegen_flags: <defaults>
</compile_context>

<pallas_src>
import functools

import jax
import jax.numpy as jnp
from jax.experimental import pallas as pl
from jax.experimental.pallas import tpu as pltpu

HIDDEN = 256
BN_EPS = 1e-5
LANE = 128


def _round_up(x, m):
    return (x + m - 1) // m * m


# ----------------------------------------------------------------------------
# Kernel
# ----------------------------------------------------------------------------
def net_ann5_kernel(x_ref, w1_ref, wh_ref, w5_ref, vec_ref, b5_ref, o_ref):
    """Fused forward pass.

    x_ref  : (B, n_in_pad)        f32
    w1_ref : (n_in_pad, 256)      bf16
    wh_ref : (3, 256, 256)        bf16   (w2, w3, w4)
    w5_ref : (256, n_out_pad)     bf16
    vec_ref: (12, 256)            f32    rows 0-3 = b1..b4, 4-7 = g1..g4, 8-11 = beta1..4
    b5_ref : (1, n_out_pad)       f32
    o_ref  : (B, n_out_pad)       f32
    """
    inv_b = jnp.float32(1.0 / x_ref.shape[0])

    def vrow(r):  # static row slice of the packed vector table -> (1, 256) f32
        return vec_ref[r:r + 1, :]

    def bn_relu(h, layer):
        # ReLU then training-mode BatchNorm1d (batch statistics), one pass.
        h = jnp.maximum(h, 0.0)
        mean = jnp.sum(h, axis=0, keepdims=True) * inv_b
        ex2 = jnp.sum(h * h, axis=0, keepdims=True) * inv_b
        var = jnp.maximum(ex2 - mean * mean, 0.0)            # biased variance
        inv_std = jax.lax.rsqrt(var + BN_EPS)                 # EUP
        return (h - mean) * inv_std * vrow(4 + layer) + vrow(8 + layer)

    # layer 1
    h = jnp.dot(x_ref[...].astype(jnp.bfloat16), w1_ref[...],
                preferred_element_type=jnp.float32) + vrow(0)
    h = bn_relu(h, 0)

    # layers 2..4 (Dropout(p=0.0) between layers is the identity -> elided)
    for i in range(3):
        h = jnp.dot(h.astype(jnp.bfloat16), wh_ref[i],
                    preferred_element_type=jnp.float32) + vrow(i + 1)
        h = bn_relu(h, i + 1)

    # layer 5 (no activation / BN)
    o_ref[...] = jnp.dot(h.astype(jnp.bfloat16), w5_ref[...],
                         preferred_element_type=jnp.float32) + b5_ref[...]


# ----------------------------------------------------------------------------
# Wrapper
# ----------------------------------------------------------------------------
@functools.partial(jax.jit, static_argnames=("n_out",))
def net_ann5_forward(x, packed, n_out):
    w1p, wh, w5p, vecs, b5p = packed
    batch, n_in = x.shape
    n_in_pad = w1p.shape[0]
    n_out_pad = w5p.shape[1]

    if n_in != n_in_pad:  # lane-pad the input (zero columns: no effect on x @ w1)
        x = jnp.pad(x, ((0, 0), (0, n_in_pad - n_in)))

    flops = 2 * batch * (n_in_pad * HIDDEN + 3 * HIDDEN * HIDDEN + HIDDEN * n_out_pad)
    bytes_accessed = (batch * n_in_pad * 4
                      + (w1p.size + wh.size + w5p.size) * 2
                      + (vecs.size + b5p.size) * 4
                      + batch * n_out_pad * 4)
    # Size-derived scoped-VMEM request: generous margin, 4 MiB floor, 64 MiB cap.
    est_vmem = 4 * bytes_accessed + 8 * batch * HIDDEN * 4 + (2 << 20)
    vmem_limit = int(min(64 << 20, max(4 << 20, est_vmem)))

    def full(a):
        return pl.BlockSpec(a.shape, lambda: (0,) * a.ndim)

    out_pad = pl.pallas_call(
        net_ann5_kernel,
        out_shape=jax.ShapeDtypeStruct((batch, n_out_pad), jnp.float32),
        grid=(),
        in_specs=[full(x), full(w1p), full(wh), full(w5p), full(vecs), full(b5p)],
        out_specs=pl.BlockSpec((batch, n_out_pad), lambda: (0, 0)),
        compiler_params=pltpu.CompilerParams(vmem_limit_bytes=vmem_limit),
        cost_estimate=pl.CostEstimate(flops=flops, transcendentals=4 * HIDDEN,
                                      bytes_accessed=bytes_accessed),
    )(x, w1p, wh, w5p, vecs, b5p)

    return out_pad[:, :n_out]


# ----------------------------------------------------------------------------
# Parameter init / packing
# ----------------------------------------------------------------------------
def init_params(key, n_in, n_out):
    """PyTorch-style nn.Linear init (U(-1/sqrt(fan_in), +)); BN gamma=1, beta=0.

    Returns the 18-element flat f32 param list in module order, with weights
    stored transposed as (fan_in, fan_out).
    """
    dims = [(n_in, HIDDEN), (HIDDEN, HIDDEN), (HIDDEN, HIDDEN),
            (HIDDEN, HIDDEN), (HIDDEN, n_out)]
    params = []
    keys = jax.random.split(key, 2 * len(dims))
    for i, (fan_in, fan_out) in enumerate(dims):
        bound = 1.0 / (fan_in ** 0.5)
        w = jax.random.uniform(keys[2 * i], (fan_in, fan_out), jnp.float32, -bound, bound)
        b = jax.random.uniform(keys[2 * i + 1], (1, fan_out), jnp.float32, -bound, bound)
        params += [w, b]
        if i < 4:  # BatchNorm1d affine params
            params += [jnp.ones((1, HIDDEN), jnp.float32),
                       jnp.zeros((1, HIDDEN), jnp.float32)]
    return params


def pack_params(params, n_in, n_out):
    """Consolidate the 18 params into 5 kernel inputs (bf16 weights, packed vecs)."""
    (w1, b1, g1, be1, w2, b2, g2, be2, w3, b3, g3, be3,
     w4, b4, g4, be4, w5, b5) = params
    n_in_pad = _round_up(max(n_in, 1), LANE)
    n_out_pad = _round_up(max(n_out, 1), LANE)

    w1p = jnp.zeros((n_in_pad, HIDDEN), jnp.float32).at[:n_in].set(w1).astype(jnp.bfloat16)
    wh = jnp.stack([w2, w3, w4]).astype(jnp.bfloat16)                 # (3, 256, 256)
    w5p = jnp.zeros((HIDDEN, n_out_pad), jnp.float32).at[:, :n_out].set(w5).astype(jnp.bfloat16)

    vecs = jnp.concatenate([b1, b2, b3, b4,                            # rows 0..3
                            g1, g2, g3, g4,                            # rows 4..7
                            be1, be2, be3, be4], axis=0).astype(jnp.float32)  # (12, 256)
    b5p = jnp.zeros((1, n_out_pad), jnp.float32).at[:, :n_out].set(b5)
    return (w1p, wh, w5p, vecs, b5p)


# ----------------------------------------------------------------------------
# Pure-JAX reference (PyTorch train-mode forward, precision-matched: bf16
# weights + bf16 matmul inputs, f32 accumulation, f32 BN)
# ----------------------------------------------------------------------------
def reference_forward(x, params):
    (w1, b1, g1, be1, w2, b2, g2, be2, w3, b3, g3, be3,
     w4, b4, g4, be4, w5, b5) = params

    def dot_bf16(a, w):
        return jnp.dot(a.astype(jnp.bfloat16), w.astype(jnp.bfloat16),
                       preferred_element_type=jnp.float32)

    def bn_relu(h, g, b):
        h = jnp.maximum(h, 0.0)
        m = jnp.mean(h, axis=0, keepdims=True)
        v = jnp.maximum(jnp.mean(h * h, axis=0, keepdims=True) - m * m, 0.0)
        return (h - m) * jax.lax.rsqrt(v + BN_EPS) * g + b

    h = bn_relu(dot_bf16(x, w1) + b1, g1, be1)
    h = bn_relu(dot_bf16(h, w2) + b2, g2, be2)
    h = bn_relu(dot_bf16(h, w3) + b3, g3, be3)
    h = bn_relu(dot_bf16(h, w4) + b4, g4, be4)
    return dot_bf16(h, w5) + b5


if __name__ == "__main__":
    key = jax.random.PRNGKey(0)
    k_x, k_p = jax.random.split(key)

    batch, n_in, n_out = 8, 64, 32
    x = jax.random.normal(k_x, (batch, n_in), jnp.float32)
    params = init_params(k_p, n_in, n_out)
    packed = pack_params(params, n_in, n_out)

    out = net_ann5_forward(x, packed, n_out)
    out = jax.block_until_ready(out)

    ref = reference_forward(x, params)
    assert out.shape == (batch, n_out)
    max_err = float(jnp.max(jnp.abs(out - ref)))
    assert jnp.allclose(out, ref, atol=5e-3, rtol=5e-3), f"mismatch vs reference (max abs err {max_err})"

    print("KERNEL_OK")
</pallas_src>

<mosaic_0001>
module attributes {stable_mosaic.version = 11 : i64} {
  func.func @net_ann5_kernel(%arg0: memref<8x128xf32, #tpu.memory_space<vmem>>, %arg1: memref<128x256xbf16, #tpu.memory_space<vmem>>, %arg2: memref<3x256x256xbf16, #tpu.memory_space<vmem>>, %arg3: memref<256x128xbf16, #tpu.memory_space<vmem>>, %arg4: memref<12x256xf32, #tpu.memory_space<vmem>>, %arg5: memref<1x128xf32, #tpu.memory_space<vmem>>, %arg6: memref<8x128xf32, #tpu.memory_space<vmem>>) attributes {dimension_semantics = [], scalar_prefetch = 0 : i64, scratch_operands = 0 : i64, tpu.core_type = #tpu.core_type<tc>} {
    %c0 = arith.constant 0 : index
    %c0_0 = arith.constant 0 : index
    %0 = vector.load %arg0[%c0, %c0_0] : memref<8x128xf32, #tpu.memory_space<vmem>>, vector<8x128xf32>
    %1 = arith.truncf %0 : vector<8x128xf32> to vector<8x128xbf16>
    %c0_1 = arith.constant 0 : index
    %c0_2 = arith.constant 0 : index
    %2 = vector.load %arg1[%c0_1, %c0_2] : memref<128x256xbf16, #tpu.memory_space<vmem>>, vector<128x256xbf16>
    %cst = arith.constant dense<0.000000e+00> : vector<8x256xf32>
    %3 = tpu.matmul %1, %2, %cst {dimension_numbers = #tpu.dot_dimension_numbers<[1], [0], [0], [1], [0, 0, 1, 1], [], []>} : vector<8x128xbf16>, vector<128x256xbf16>, vector<8x256xf32> -> vector<8x256xf32>
    %c0_3 = arith.constant 0 : index
    %c0_4 = arith.constant 0 : index
    %4 = vector.load %arg4[%c0_3, %c0_4] : memref<12x256xf32, #tpu.memory_space<vmem>>, vector<1x256xf32>
    %5 = vector.broadcast %4 : vector<1x256xf32> to vector<8x256xf32>
    %6 = arith.addf %3, %5 : vector<8x256xf32>
    %cst_5 = arith.constant 0.000000e+00 : f32
    %7 = vector.broadcast %cst_5 : f32 to vector<8x256xf32>
    %8 = arith.maximumf %6, %7 : vector<8x256xf32>
    %cst_6 = arith.constant dense<0.000000e+00> : vector<256xf32>
    %9 = vector.multi_reduction <add>, %8, %cst_6 [0] : vector<8x256xf32> to vector<256xf32>
    %10 = vector.shape_cast %9 : vector<256xf32> to vector<1x256xf32>
    %cst_7 = arith.constant 1.250000e-01 : f32
    %11 = vector.broadcast %cst_7 : f32 to vector<1x256xf32>
    %12 = arith.mulf %10, %11 : vector<1x256xf32>
    %13 = arith.mulf %8, %8 : vector<8x256xf32>
    %cst_8 = arith.constant dense<0.000000e+00> : vector<256xf32>
    %14 = vector.multi_reduction <add>, %13, %cst_8 [0] : vector<8x256xf32> to vector<256xf32>
    %15 = vector.shape_cast %14 : vector<256xf32> to vector<1x256xf32>
    %cst_9 = arith.constant 1.250000e-01 : f32
    %16 = vector.broadcast %cst_9 : f32 to vector<1x256xf32>
    %17 = arith.mulf %15, %16 : vector<1x256xf32>
    %18 = arith.mulf %12, %12 : vector<1x256xf32>
    %19 = arith.subf %17, %18 : vector<1x256xf32>
    %cst_10 = arith.constant 0.000000e+00 : f32
    %20 = vector.broadcast %cst_10 : f32 to vector<1x256xf32>
    %21 = arith.maximumf %19, %20 : vector<1x256xf32>
    %cst_11 = arith.constant 9.99999974E-6 : f32
    %22 = vector.broadcast %cst_11 : f32 to vector<1x256xf32>
    %23 = arith.addf %21, %22 : vector<1x256xf32>
    %24 = math.rsqrt %23 : vector<1x256xf32>
    %25 = vector.broadcast %12 : vector<1x256xf32> to vector<8x256xf32>
    %26 = arith.subf %8, %25 : vector<8x256xf32>
    %27 = vector.broadcast %24 : vector<1x256xf32> to vector<8x256xf32>
    %28 = arith.mulf %26, %27 : vector<8x256xf32>
    %c4 = arith.constant 4 : index
    %c0_12 = arith.constant 0 : index
    %29 = vector.load %arg4[%c4, %c0_12] : memref<12x256xf32, #tpu.memory_space<vmem>>, vector<1x256xf32>
    %30 = vector.broadcast %29 : vector<1x256xf32> to vector<8x256xf32>
    %31 = arith.mulf %28, %30 : vector<8x256xf32>
    %c8 = arith.constant 8 : index
    %c0_13 = arith.constant 0 : index
    %32 = vector.load %arg4[%c8, %c0_13] : memref<12x256xf32, #tpu.memory_space<vmem>>, vector<1x256xf32>
    %33 = vector.broadcast %32 : vector<1x256xf32> to vector<8x256xf32>
    %34 = arith.addf %31, %33 : vector<8x256xf32>
    %35 = arith.truncf %34 : vector<8x256xf32> to vector<8x256xbf16>
    %c0_14 = arith.constant 0 : index
    %c0_15 = arith.constant 0 : index
    %c0_16 = arith.constant 0 : index
    %36 = vector.load %arg2[%c0_14, %c0_15, %c0_16] : memref<3x256x256xbf16, #tpu.memory_space<vmem>>, vector<1x256x256xbf16>
    %37 = vector.shape_cast %36 : vector<1x256x256xbf16> to vector<256x256xbf16>
    %cst_17 = arith.constant dense<0.000000e+00> : vector<8x256xf32>
    %38 = tpu.matmul %35, %37, %cst_17 {dimension_numbers = #tpu.dot_dimension_numbers<[1], [0], [0], [1], [0, 0, 1, 1], [], []>} : vector<8x256xbf16>, vector<256x256xbf16>, vector<8x256xf32> -> vector<8x256xf32>
    %c1 = arith.constant 1 : index
    %c0_18 = arith.constant 0 : index
    %39 = vector.load %arg4[%c1, %c0_18] : memref<12x256xf32, #tpu.memory_space<vmem>>, vector<1x256xf32>
    %40 = vector.broadcast %39 : vector<1x256xf32> to vector<8x256xf32>
    %41 = arith.addf %38, %40 : vector<8x256xf32>
    %cst_19 = arith.constant 0.000000e+00 : f32
    %42 = vector.broadcast %cst_19 : f32 to vector<8x256xf32>
    %43 = arith.maximumf %41, %42 : vector<8x256xf32>
    %cst_20 = arith.constant dense<0.000000e+00> : vector<256xf32>
    %44 = vector.multi_reduction <add>, %43, %cst_20 [0] : vector<8x256xf32> to vector<256xf32>
    %45 = vector.shape_cast %44 : vector<256xf32> to vector<1x256xf32>
    %cst_21 = arith.constant 1.250000e-01 : f32
    %46 = vector.broadcast %cst_21 : f32 to vector<1x256xf32>
    %47 = arith.mulf %45, %46 : vector<1x256xf32>
    %48 = arith.mulf %43, %43 : vector<8x256xf32>
    %cst_22 = arith.constant dense<0.000000e+00> : vector<256xf32>
    %49 = vector.multi_reduction <add>, %48, %cst_22 [0] : vector<8x256xf32> to vector<256xf32>
    %50 = vector.shape_cast %49 : vector<256xf32> to vector<1x256xf32>
    %cst_23 = arith.constant 1.250000e-01 : f32
    %51 = vector.broadcast %cst_23 : f32 to vector<1x256xf32>
    %52 = arith.mulf %50, %51 : vector<1x256xf32>
    %53 = arith.mulf %47, %47 : vector<1x256xf32>
    %54 = arith.subf %52, %53 : vector<1x256xf32>
    %cst_24 = arith.constant 0.000000e+00 : f32
    %55 = vector.broadcast %cst_24 : f32 to vector<1x256xf32>
    %56 = arith.maximumf %54, %55 : vector<1x256xf32>
    %cst_25 = arith.constant 9.99999974E-6 : f32
    %57 = vector.broadcast %cst_25 : f32 to vector<1x256xf32>
    %58 = arith.addf %56, %57 : vector<1x256xf32>
    %59 = math.rsqrt %58 : vector<1x256xf32>
    %60 = vector.broadcast %47 : vector<1x256xf32> to vector<8x256xf32>
    %61 = arith.subf %43, %60 : vector<8x256xf32>
    %62 = vector.broadcast %59 : vector<1x256xf32> to vector<8x256xf32>
    %63 = arith.mulf %61, %62 : vector<8x256xf32>
    %c5 = arith.constant 5 : index
    %c0_26 = arith.constant 0 : index
    %64 = vector.load %arg4[%c5, %c0_26] : memref<12x256xf32, #tpu.memory_space<vmem>>, vector<1x256xf32>
    %65 = vector.broadcast %64 : vector<1x256xf32> to vector<8x256xf32>
    %66 = arith.mulf %63, %65 : vector<8x256xf32>
    %c9 = arith.constant 9 : index
    %c0_27 = arith.constant 0 : index
    %67 = vector.load %arg4[%c9, %c0_27] : memref<12x256xf32, #tpu.memory_space<vmem>>, vector<1x256xf32>
    %68 = vector.broadcast %67 : vector<1x256xf32> to vector<8x256xf32>
    %69 = arith.addf %66, %68 : vector<8x256xf32>
    %70 = arith.truncf %69 : vector<8x256xf32> to vector<8x256xbf16>
    %c1_28 = arith.constant 1 : index
    %c0_29 = arith.constant 0 : index
    %c0_30 = arith.constant 0 : index
    %71 = vector.load %arg2[%c1_28, %c0_29, %c0_30] : memref<3x256x256xbf16, #tpu.memory_space<vmem>>, vector<1x256x256xbf16>
    %72 = vector.shape_cast %71 : vector<1x256x256xbf16> to vector<256x256xbf16>
    %cst_31 = arith.constant dense<0.000000e+00> : vector<8x256xf32>
    %73 = tpu.matmul %70, %72, %cst_31 {dimension_numbers = #tpu.dot_dimension_numbers<[1], [0], [0], [1], [0, 0, 1, 1], [], []>} : vector<8x256xbf16>, vector<256x256xbf16>, vector<8x256xf32> -> vector<8x256xf32>
    %c2 = arith.constant 2 : index
    %c0_32 = arith.constant 0 : index
    %74 = vector.load %arg4[%c2, %c0_32] : memref<12x256xf32, #tpu.memory_space<vmem>>, vector<1x256xf32>
    %75 = vector.broadcast %74 : vector<1x256xf32> to vector<8x256xf32>
    %76 = arith.addf %73, %75 : vector<8x256xf32>
    %cst_33 = arith.constant 0.000000e+00 : f32
    %77 = vector.broadcast %cst_33 : f32 to vector<8x256xf32>
    %78 = arith.maximumf %76, %77 : vector<8x256xf32>
    %cst_34 = arith.constant dense<0.000000e+00> : vector<256xf32>
    %79 = vector.multi_reduction <add>, %78, %cst_34 [0] : vector<8x256xf32> to vector<256xf32>
    %80 = vector.shape_cast %79 : vector<256xf32> to vector<1x256xf32>
    %cst_35 = arith.constant 1.250000e-01 : f32
    %81 = vector.broadcast %cst_35 : f32 to vector<1x256xf32>
    %82 = arith.mulf %80, %81 : vector<1x256xf32>
    %83 = arith.mulf %78, %78 : vector<8x256xf32>
    %cst_36 = arith.constant dense<0.000000e+00> : vector<256xf32>
    %84 = vector.multi_reduction <add>, %83, %cst_36 [0] : vector<8x256xf32> to vector<256xf32>
    %85 = vector.shape_cast %84 : vector<256xf32> to vector<1x256xf32>
    %cst_37 = arith.constant 1.250000e-01 : f32
    %86 = vector.broadcast %cst_37 : f32 to vector<1x256xf32>
    %87 = arith.mulf %85, %86 : vector<1x256xf32>
    %88 = arith.mulf %82, %82 : vector<1x256xf32>
    %89 = arith.subf %87, %88 : vector<1x256xf32>
    %cst_38 = arith.constant 0.000000e+00 : f32
    %90 = vector.broadcast %cst_38 : f32 to vector<1x256xf32>
    %91 = arith.maximumf %89, %90 : vector<1x256xf32>
    %cst_39 = arith.constant 9.99999974E-6 : f32
    %92 = vector.broadcast %cst_39 : f32 to vector<1x256xf32>
    %93 = arith.addf %91, %92 : vector<1x256xf32>
    %94 = math.rsqrt %93 : vector<1x256xf32>
    %95 = vector.broadcast %82 : vector<1x256xf32> to vector<8x256xf32>
    %96 = arith.subf %78, %95 : vector<8x256xf32>
    %97 = vector.broadcast %94 : vector<1x256xf32> to vector<8x256xf32>
    %98 = arith.mulf %96, %97 : vector<8x256xf32>
    %c6 = arith.constant 6 : index
    %c0_40 = arith.constant 0 : index
    %99 = vector.load %arg4[%c6, %c0_40] : memref<12x256xf32, #tpu.memory_space<vmem>>, vector<1x256xf32>
    %100 = vector.broadcast %99 : vector<1x256xf32> to vector<8x256xf32>
    %101 = arith.mulf %98, %100 : vector<8x256xf32>
    %c10 = arith.constant 10 : index
    %c0_41 = arith.constant 0 : index
    %102 = vector.load %arg4[%c10, %c0_41] : memref<12x256xf32, #tpu.memory_space<vmem>>, vector<1x256xf32>
    %103 = vector.broadcast %102 : vector<1x256xf32> to vector<8x256xf32>
    %104 = arith.addf %101, %103 : vector<8x256xf32>
    %105 = arith.truncf %104 : vector<8x256xf32> to vector<8x256xbf16>
    %c2_42 = arith.constant 2 : index
    %c0_43 = arith.constant 0 : index
    %c0_44 = arith.constant 0 : index
    %106 = vector.load %arg2[%c2_42, %c0_43, %c0_44] : memref<3x256x256xbf16, #tpu.memory_space<vmem>>, vector<1x256x256xbf16>
    %107 = vector.shape_cast %106 : vector<1x256x256xbf16> to vector<256x256xbf16>
    %cst_45 = arith.constant dense<0.000000e+00> : vector<8x256xf32>
    %108 = tpu.matmul %105, %107, %cst_45 {dimension_numbers = #tpu.dot_dimension_numbers<[1], [0], [0], [1], [0, 0, 1, 1], [], []>} : vector<8x256xbf16>, vector<256x256xbf16>, vector<8x256xf32> -> vector<8x256xf32>
    %c3 = arith.constant 3 : index
    %c0_46 = arith.constant 0 : index
    %109 = vector.load %arg4[%c3, %c0_46] : memref<12x256xf32, #tpu.memory_space<vmem>>, vector<1x256xf32>
    %110 = vector.broadcast %109 : vector<1x256xf32> to vector<8x256xf32>
    %111 = arith.addf %108, %110 : vector<8x256xf32>
    %cst_47 = arith.constant 0.000000e+00 : f32
    %112 = vector.broadcast %cst_47 : f32 to vector<8x256xf32>
    %113 = arith.maximumf %111, %112 : vector<8x256xf32>
    %cst_48 = arith.constant dense<0.000000e+00> : vector<256xf32>
    %114 = vector.multi_reduction <add>, %113, %cst_48 [0] : vector<8x256xf32> to vector<256xf32>
    %115 = vector.shape_cast %114 : vector<256xf32> to vector<1x256xf32>
    %cst_49 = arith.constant 1.250000e-01 : f32
    %116 = vector.broadcast %cst_49 : f32 to vector<1x256xf32>
    %117 = arith.mulf %115, %116 : vector<1x256xf32>
    %118 = arith.mulf %113, %113 : vector<8x256xf32>
    %cst_50 = arith.constant dense<0.000000e+00> : vector<256xf32>
    %119 = vector.multi_reduction <add>, %118, %cst_50 [0] : vector<8x256xf32> to vector<256xf32>
    %120 = vector.shape_cast %119 : vector<256xf32> to vector<1x256xf32>
    %cst_51 = arith.constant 1.250000e-01 : f32
    %121 = vector.broadcast %cst_51 : f32 to vector<1x256xf32>
    %122 = arith.mulf %120, %121 : vector<1x256xf32>
    %123 = arith.mulf %117, %117 : vector<1x256xf32>
    %124 = arith.subf %122, %123 : vector<1x256xf32>
    %cst_52 = arith.constant 0.000000e+00 : f32
    %125 = vector.broadcast %cst_52 : f32 to vector<1x256xf32>
    %126 = arith.maximumf %124, %125 : vector<1x256xf32>
    %cst_53 = arith.constant 9.99999974E-6 : f32
    %127 = vector.broadcast %cst_53 : f32 to vector<1x256xf32>
    %128 = arith.addf %126, %127 : vector<1x256xf32>
    %129 = math.rsqrt %128 : vector<1x256xf32>
    %130 = vector.broadcast %117 : vector<1x256xf32> to vector<8x256xf32>
    %131 = arith.subf %113, %130 : vector<8x256xf32>
    %132 = vector.broadcast %129 : vector<1x256xf32> to vector<8x256xf32>
    %133 = arith.mulf %131, %132 : vector<8x256xf32>
    %c7 = arith.constant 7 : index
    %c0_54 = arith.constant 0 : index
    %134 = vector.load %arg4[%c7, %c0_54] : memref<12x256xf32, #tpu.memory_space<vmem>>, vector<1x256xf32>
    %135 = vector.broadcast %134 : vector<1x256xf32> to vector<8x256xf32>
    %136 = arith.mulf %133, %135 : vector<8x256xf32>
    %c11 = arith.constant 11 : index
    %c0_55 = arith.constant 0 : index
    %137 = vector.load %arg4[%c11, %c0_55] : memref<12x256xf32, #tpu.memory_space<vmem>>, vector<1x256xf32>
    %138 = vector.broadcast %137 : vector<1x256xf32> to vector<8x256xf32>
    %139 = arith.addf %136, %138 : vector<8x256xf32>
    %140 = arith.truncf %139 : vector<8x256xf32> to vector<8x256xbf16>
    %c0_56 = arith.constant 0 : index
    %c0_57 = arith.constant 0 : index
    %141 = vector.load %arg3[%c0_56, %c0_57] : memref<256x128xbf16, #tpu.memory_space<vmem>>, vector<256x128xbf16>
    %cst_58 = arith.constant dense<0.000000e+00> : vector<8x128xf32>
    %142 = tpu.matmul %140, %141, %cst_58 {dimension_numbers = #tpu.dot_dimension_numbers<[1], [0], [0], [1], [0, 0, 1, 1], [], []>} : vector<8x256xbf16>, vector<256x128xbf16>, vector<8x128xf32> -> vector<8x128xf32>
    %c0_59 = arith.constant 0 : index
    %c0_60 = arith.constant 0 : index
    %143 = vector.load %arg5[%c0_59, %c0_60] : memref<1x128xf32, #tpu.memory_space<vmem>>, vector<1x128xf32>
    %144 = vector.broadcast %143 : vector<1x128xf32> to vector<8x128xf32>
    %145 = arith.addf %142, %144 : vector<8x128xf32>
    %c0_61 = arith.constant 0 : index
    %c0_62 = arith.constant 0 : index
    %146 = vector.load %arg6[%c0_61, %c0_62] : memref<8x128xf32, #tpu.memory_space<vmem>>, vector<8x128xf32>
    tpu.vector_store %arg6[%c0_61, %c0_62], %145 {strides = array<i32>} : memref<8x128xf32, #tpu.memory_space<vmem>>, vector<8x128xf32>,
    return
  }
}

</mosaic_0001>

<llo_original>
// kernel: net_ann5_forward.1
$region0: #{net_ann5_forward.1}
  #allocation0 [shape = 'u32[]', space=smem, size = 0x4, offset = 0x4, fixed_abs, tag = 'smem constant byte address 0x4 - core index']
  #allocation1 [shape = 'u32[144,128]{1,0:T(1,128)}', space=vmem, size = 0x12000, scoped, tag = 'internal scratch']
  %s0 = inlined_call_operand.vmem [shape: f32[8,128], index: 0, kind: input, shape index: {}]
  %s1 = inlined_call_operand.hbm [shape: bf16[128,256], index: 1, kind: input, shape index: {}]
  %s2 = inlined_call_operand.hbm [shape: bf16[3,256,256], index: 2, kind: input, shape index: {}]
  %s3 = inlined_call_operand.hbm [shape: bf16[256,128], index: 3, kind: input, shape index: {}]
  %s4 = inlined_call_operand.vmem [shape: f32[12,256], index: 4, kind: input, shape index: {}]
  %s5 = inlined_call_operand.vmem [shape: f32[1,128], index: 5, kind: input, shape index: {}]
  %s6 = inlined_call_operand.hbm [shape: f32[8,128], index: 6, kind: output, shape index: {}]
  %s7 = sld [smem:[#allocation0]]
  $region46: #{net_ann5_forward.1} parent=0
    _
  %s9 = ssub.s32 1, %s7
  %s10 = scalar_select 0, %s9, %s7
  $region1: #{net_ann5_forward.1} parent=0
    #allocation2 [shape = 'u8[65536]{0}', space=vmem, size = 0x10000, scoped, tag = 'input window, operand 1, single buffered']
    #allocation3 [shape = 's32[1]{0}', space=sflag, size = 0x4, scoped, tag = 'scoped memory for net_ann5_forward.1']
    #allocation4 [shape = 's32[1]{0}', space=sflag, size = 0x4, scoped, tag = 'scoped memory for net_ann5_forward.1']
    #allocation5 [shape = 'u8[393216]{0}', space=vmem, size = 0x60000, scoped, tag = 'input window, operand 2, single buffered']
    #allocation6 [shape = 's32[1]{0}', space=sflag, size = 0x4, scoped, tag = 'scoped memory for net_ann5_forward.1']
    #allocation7 [shape = 'u8[65536]{0}', space=vmem, size = 0x10000, scoped, tag = 'input window, operand 3, single buffered']
    #allocation8 [shape = 'u8[4096]{0}', space=vmem, size = 0x1000, scoped, tag = 'output window, operand 0, single buffered']
    %11 = vsyncpa [#allocation3], 0
    %12 = vsyncpa [#allocation6], 0
    %13 = vsyncpa [#allocation4], 0
    // Predicated region
    $region2: #{net_ann5_forward.1} parent=1 // pred_check
      _
    $region3: #{net_ann5_forward.1} parent=1 // pred_check_branch
      %15 = sbr.rel (0) target = $region5
    $region4: #{net_ann5_forward.1} parent=1 // pred_region
      _
    $region5: #{net_ann5_forward.1} parent=1 // pred_fallthru
      _
    // Predicated region
    $region6: #{net_ann5_forward.1} parent=1 // pred_check
      _
    $region7: #{net_ann5_forward.1} parent=1 // pred_check_branch
      %17 = sbr.rel (0) target = $region9
    $region8: #{net_ann5_forward.1} parent=1 // pred_region
      %s19 = ssub.s32 2048, 2048
      %20 = vsyncadd [#allocation3], %s19
      %s21 = sshll.u32 [#allocation2], 4
      %s22 = int_to_ptr.vmem [resolvable:$true] %s21
      %27 = dma.hbm_to_vmem [thread:$0]  %s1, 2048, %s22, [#allocation3], 128, 128, 8
    $region9: #{net_ann5_forward.1} parent=1 // pred_fallthru
      _
    // Predicated region
    $region10: #{net_ann5_forward.1} parent=1 // pred_check
      _
    $region11: #{net_ann5_forward.1} parent=1 // pred_check_branch
      %29 = sbr.rel (0) target = $region13
    $region12: #{net_ann5_forward.1} parent=1 // pred_region
      %s31 = ssub.s32 12288, 12288
      %32 = vsyncadd [#allocation6], %s31
      %s33 = sshll.u32 [#allocation5], 4
      %s34 = int_to_ptr.vmem [resolvable:$true] %s33
      %39 = dma.hbm_to_vmem [thread:$0]  %s2, 12288, %s34, [#allocation6], 128, 128, 8
    $region13: #{net_ann5_forward.1} parent=1 // pred_fallthru
      _
    // Predicated region
    $region14: #{net_ann5_forward.1} parent=1 // pred_check
      _
    $region15: #{net_ann5_forward.1} parent=1 // pred_check_branch
      %41 = sbr.rel (0) target = $region17
    $region16: #{net_ann5_forward.1} parent=1 // pred_region
      %s43 = ssub.s32 2048, 2048
      %44 = vsyncadd [#allocation6], %s43
      %s45 = sshll.u32 [#allocation7], 4
      %s46 = int_to_ptr.vmem [resolvable:$true] %s45
      %51 = dma.hbm_to_vmem [thread:$0]  %s3, 2048, %s46, [#allocation6], 64, 64, 4
    $region17: #{net_ann5_forward.1} parent=1 // pred_fallthru
      _
    // Predicated region
    $region18: #{net_ann5_forward.1} parent=1 // pred_check
      _
    $region19: #{net_ann5_forward.1} parent=1 // pred_check_branch
      %53 = sbr.rel (0) target = $region21
    $region20: #{net_ann5_forward.1} parent=1 // pred_region
      _
    $region21: #{net_ann5_forward.1} parent=1 // pred_fallthru
      _
    // Predicated region
    $region22: #{net_ann5_forward.1} parent=1 // pred_check
      _
    $region23: #{net_ann5_forward.1} parent=1 // pred_check_branch
      %55 = sbr.rel (0) target = $region25
    $region24: #{net_ann5_forward.1} parent=1 // pred_region
      _
    $region25: #{net_ann5_forward.1} parent=1 // pred_fallthru
      _
    // Predicated region
    $region26: #{net_ann5_forward.1} parent=1 // pred_check
      _
    $region27: #{net_ann5_forward.1} parent=1 // pred_check_branch
      %57 = sbr.rel (0) target = $region29
    $region28: #{net_ann5_forward.1} parent=1 // pred_region
      %58 = dma.done [#allocation3], 2048
    $region29: #{net_ann5_forward.1} parent=1 // pred_fallthru
      _
    // Predicated region
    $region30: #{net_ann5_forward.1} parent=1 // pred_check
      _
    $region31: #{net_ann5_forward.1} parent=1 // pred_check_branch
      %60 = sbr.rel (0) target = $region33
    $region32: #{net_ann5_forward.1} parent=1 // pred_region
      %61 = dma.done [#allocation6], 12288
    $region33: #{net_ann5_forward.1} parent=1 // pred_fallthru
      _
    // Predicated region
    $region34: #{net_ann5_forward.1} parent=1 // pred_check
      _
    $region35: #{net_ann5_forward.1} parent=1 // pred_check_branch
      %63 = sbr.rel (0) target = $region37
    $region36: #{net_ann5_forward.1} parent=1 // pred_region
      %64 = dma.done [#allocation6], 2048
    $region37: #{net_ann5_forward.1} parent=1 // pred_fallthru
      _
    %v66 = vld [vmem:[%s0] sm:$0xff]
    %v67 = vpack.c.bf16 %v66, %v66
    %v68 = vld [vmem:[#allocation2] sm:$0xff]
    %v69 = vld [vmem:[#allocation2 + $0x8] sm:$0xff]
    %v70 = vld [vmem:[#allocation2 + $0x10] sm:$0xff]
    %v71 = vld [vmem:[#allocation2 + $0x18] sm:$0xff]
    %v72 = vld [vmem:[#allocation2 + $0x20] sm:$0xff]
    %v73 = vld [vmem:[#allocation2 + $0x28] sm:$0xff]
    %v74 = vld [vmem:[#allocation2 + $0x30] sm:$0xff]
    %v75 = vld [vmem:[#allocation2 + $0x38] sm:$0xff]
    %v76 = vld [vmem:[#allocation2 + $0x40] sm:$0xff]
    %v77 = vld [vmem:[#allocation2 + $0x48] sm:$0xff]
    %v78 = vld [vmem:[#allocation2 + $0x50] sm:$0xff]
    %v79 = vld [vmem:[#allocation2 + $0x58] sm:$0xff]
    %v80 = vld [vmem:[#allocation2 + $0x60] sm:$0xff]
    %v81 = vld [vmem:[#allocation2 + $0x68] sm:$0xff]
    %v82 = vld [vmem:[#allocation2 + $0x70] sm:$0xff]
    %v83 = vld [vmem:[#allocation2 + $0x78] sm:$0xff]
    %v84 = vld [vmem:[%s4] ss:$8 sm:$0x3]
    %v86 = vlaneseq
    %v87 = vshrl.u32 %v86, 7
    %v88 = vsub.s32 0, %v87
    %v89 = vrot.slane %v84, %v88
    %v90 = vlaneseq
    %v91 = vshrl.u32 %v90, 7
    %v92 = vsub.s32 1, %v91
    %v93 = vrot.slane %v84, %v92
    %v112 = vunpack.c.l.b16 %v68
    %v113 = vunpack.c.h.b16 %v68
    %v114 = vunpack.c.l.b16 %v69
    %v115 = vunpack.c.h.b16 %v69
    %v116 = vunpack.c.l.b16 %v70
    %v117 = vunpack.c.h.b16 %v70
    %v118 = vunpack.c.l.b16 %v71
    %v119 = vunpack.c.h.b16 %v71
    %v120 = vunpack.c.l.b16 %v72
    %v121 = vunpack.c.h.b16 %v72
    %v122 = vunpack.c.l.b16 %v73
    %v123 = vunpack.c.h.b16 %v73
    %v124 = vunpack.c.l.b16 %v74
    %v125 = vunpack.c.h.b16 %v74
    %v126 = vunpack.c.l.b16 %v75
    %v127 = vunpack.c.h.b16 %v75
    %v128 = vunpack.c.l.b16 %v76
    %v129 = vunpack.c.h.b16 %v76
    %v130 = vunpack.c.l.b16 %v77
    %v131 = vunpack.c.h.b16 %v77
    %v132 = vunpack.c.l.b16 %v78
    %v133 = vunpack.c.h.b16 %v78
    %v134 = vunpack.c.l.b16 %v79
    %v135 = vunpack.c.h.b16 %v79
    %v136 = vunpack.c.l.b16 %v80
    %v137 = vunpack.c.h.b16 %v80
    %v138 = vunpack.c.l.b16 %v81
    %v139 = vunpack.c.h.b16 %v81
    %v140 = vunpack.c.l.b16 %v82
    %v141 = vunpack.c.h.b16 %v82
    %v142 = vunpack.c.l.b16 %v83
    %v143 = vunpack.c.h.b16 %v83
    %v144 = vpack.c.b16 %v114, %v112
    %v145 = vpack.c.b16 %v115, %v113
    %v146 = vpack.c.b16 %v118, %v116
    %v147 = vpack.c.b16 %v119, %v117
    %v148 = vpack.c.b16 %v122, %v120
    %v149 = vpack.c.b16 %v123, %v121
    %v150 = vpack.c.b16 %v126, %v124
    %v151 = vpack.c.b16 %v127, %v125
    %v152 = vpack.c.b16 %v130, %v128
    %v153 = vpack.c.b16 %v131, %v129
    %v154 = vpack.c.b16 %v134, %v132
    %v155 = vpack.c.b16 %v135, %v133
    %v156 = vpack.c.b16 %v138, %v136
    %v157 = vpack.c.b16 %v139, %v137
    %v158 = vpack.c.b16 %v142, %v140
    %v159 = vpack.c.b16 %v143, %v141
    %176 = vmatprep.subr.bf16.mxu0 %v145
    %177 = vmatpush1.bf16.msra.mxu0 %v144
    %178 = vmatprep.subr.bf16.mxu0 %v147
    %179 = vmatpush1.bf16.msra.mxu0 %v146
    %180 = vmatprep.subr.bf16.mxu0 %v149
    %181 = vmatpush1.bf16.msra.mxu0 %v148
    %182 = vmatprep.subr.bf16.mxu0 %v151
    %183 = vmatpush1.bf16.msra.mxu0 %v150
    %184 = vmatprep.subr.bf16.mxu0 %v153
    %185 = vmatpush1.bf16.msra.mxu0 %v152
    %186 = vmatprep.subr.bf16.mxu0 %v155
    %187 = vmatpush1.bf16.msra.mxu0 %v154
    %188 = vmatprep.subr.bf16.mxu0 %v157
    %189 = vmatpush1.bf16.msra.mxu0 %v156
    %190 = vmatprep.subr.bf16.mxu0 %v159
    %191 = vmatpush1.bf16.msra.mxu0 %v158
    %192 = vmatprep.subr.bf16.mxu0 0
    %193 = vmatpush1.bf16.msra.mxu0 0
    %194 = vmatprep.subr.bf16.mxu0 0
    %195 = vmatpush1.bf16.msra.mxu0 0
    %196 = vmatprep.subr.bf16.mxu0 0
    %197 = vmatpush1.bf16.msra.mxu0 0
    %198 = vmatprep.subr.bf16.mxu0 0
    %199 = vmatpush1.bf16.msra.mxu0 0
    %200 = vmatprep.subr.bf16.mxu0 0
    %201 = vmatpush1.bf16.msra.mxu0 0
    %202 = vmatprep.subr.bf16.mxu0 0
    %203 = vmatpush1.bf16.msra.mxu0 0
    %204 = vmatprep.subr.bf16.mxu0 0
    %205 = vmatpush1.bf16.msra.mxu0 0
    %206 = vmatprep.subr.bf16.mxu0 0
    %207 = vmatpush1.bf16.msra.mxu0 0
    %208 = vmatprep.mubr.bf16.mxu0 0
    %209 = vmatmul.mubr.bf16.gmra.mrb[0].mxu0 %v67
    %v210 = vpop.f32.mrb[0].mxu0
    %v211 = vadd.f32 %v89, %v210
    %v212 = vpop.f32.mrb[0].mxu0
    %v213 = vadd.f32 %v93, %v212
    %v214 = vpop.f32.mrb[0].mxu0
    %v215 = vpop.f32.mrb[0].mxu0
    %216 = vdwg.mxu0
    %v217 = vmax.f32 %v211, 0.0
    %v218 = vmax.f32 %v213, 0.0
    %v219 = vrot.slane %v217, 4
    %v220 = vadd.f32 %v217, %v219
    %v221 = vrot.slane %v220, 2
    %v222 = vadd.f32 %v220, %v221
    %v223 = vrot.slane %v222, 1
    %v224 = vadd.f32 %v222, %v223
    %v225 = vrot.slane %v218, 4
    %v226 = vadd.f32 %v218, %v225
    %v227 = vrot.slane %v226, 2
    %v228 = vadd.f32 %v226, %v227
    %v229 = vrot.slane %v228, 1
    %v230 = vadd.f32 %v228, %v229
    %v231 = vmul.f32 %v224, 0.125
    %v232 = vmul.f32 %v230, 0.125
    %v233 = vmul.f32 %v217, %v217
    %v234 = vmul.f32 %v218, %v218
    %v235 = vrot.slane %v233, 4
    %v236 = vadd.f32 %v233, %v235
    %v237 = vrot.slane %v236, 2
    %v238 = vadd.f32 %v236, %v237
    %v239 = vrot.slane %v238, 1
    %v240 = vadd.f32 %v238, %v239
    %v241 = vrot.slane %v234, 4
    %v242 = vadd.f32 %v234, %v241
    %v243 = vrot.slane %v242, 2
    %v244 = vadd.f32 %v242, %v243
    %v245 = vrot.slane %v244, 1
    %v246 = vadd.f32 %v244, %v245
    %v247 = vmul.f32 %v240, 0.125
    %v248 = vmul.f32 %v246, 0.125
    %v249 = vmul.f32 %v231, %v231
    %v250 = vmul.f32 %v232, %v232
    %v251 = vsub.f32 %v247, %v249
    %v252 = vsub.f32 %v248, %v250
    %v253 = vmax.f32 %v251, 0.0
    %v254 = vmax.f32 %v252, 0.0
    %v255 = vadd.f32 %v253, 1e-05
    %v256 = vadd.f32 %v254, 1e-05
    %v257 = vrsqrt.pop %v255
    %v258 = vrsqrt.pop %v256
    %v259 = vsub.f32 %v217, %v231
    %v260 = vsub.f32 %v218, %v232
    %v261 = vmul.f32 %v259, %v257
    %v262 = vmul.f32 %v260, %v258
    %s263 = scalar_lea.vmem %s4, 4
    %v264 = vld [vmem:[%s263] ss:$8 sm:$0x3]
    %v266 = vlaneseq
    %v267 = vshrl.u32 %v266, 7
    %v268 = vsub.s32 0, %v267
    %v269 = vrot.slane %v264, %v268
    %v270 = vlaneseq
    %v271 = vshrl.u32 %v270, 7
    %v272 = vsub.s32 1, %v271
    %v273 = vrot.slane %v264, %v272
    %v276 = vmul.f32 %v261, %v269
    %v277 = vmul.f32 %v262, %v273
    %s278 = scalar_lea.vmem %s4, 16
    %v279 = vld [vmem:[%s278] ss:$8 sm:$0x3]
    %v281 = vlaneseq
    %v282 = vshrl.u32 %v281, 7
    %v283 = vsub.s32 0, %v282
    %v284 = vrot.slane %v279, %v283
    %v285 = vlaneseq
    %v286 = vshrl.u32 %v285, 7
    %v287 = vsub.s32 1, %v286
    %v288 = vrot.slane %v279, %v287
    %v291 = vadd.f32 %v276, %v284
    %v292 = vadd.f32 %v277, %v288
    %v293 = vpack.c.bf16 %v291, %v291
    %v294 = vpack.c.bf16 %v292, %v292
    %v295 = vld [vmem:[#allocation5] sm:$0xff]
    %v296 = vld [vmem:[#allocation5 + $0x8] sm:$0xff]
    %v297 = vld [vmem:[#allocation5 + $0x10] sm:$0xff]
    %v298 = vld [vmem:[#allocation5 + $0x18] sm:$0xff]
    %v299 = vld [vmem:[#allocation5 + $0x20] sm:$0xff]
    %v300 = vld [vmem:[#allocation5 + $0x28] sm:$0xff]
    %v301 = vld [vmem:[#allocation5 + $0x30] sm:$0xff]
    %v302 = vld [vmem:[#allocation5 + $0x38] sm:$0xff]
    %v303 = vld [vmem:[#allocation5 + $0x40] sm:$0xff]
    %v304 = vld [vmem:[#allocation5 + $0x48] sm:$0xff]
    %v305 = vld [vmem:[#allocation5 + $0x50] sm:$0xff]
    %v306 = vld [vmem:[#allocation5 + $0x58] sm:$0xff]
    %v307 = vld [vmem:[#allocation5 + $0x60] sm:$0xff]
    %v308 = vld [vmem:[#allocation5 + $0x68] sm:$0xff]
    %v309 = vld [vmem:[#allocation5 + $0x70] sm:$0xff]
    %v310 = vld [vmem:[#allocation5 + $0x78] sm:$0xff]
    %v311 = vld [vmem:[#allocation5 + $0x80] sm:$0xff]
    %v312 = vld [vmem:[#allocation5 + $0x88] sm:$0xff]
    %v313 = vld [vmem:[#allocation5 + $0x90] sm:$0xff]
    %v314 = vld [vmem:[#allocation5 + $0x98] sm:$0xff]
    %v315 = vld [vmem:[#allocation5 + $0xa0] sm:$0xff]
    %v316 = vld [vmem:[#allocation5 + $0xa8] sm:$0xff]
    %v317 = vld [vmem:[#allocation5 + $0xb0] sm:$0xff]
    %v318 = vld [vmem:[#allocation5 + $0xb8] sm:$0xff]
    %v319 = vld [vmem:[#allocation5 + $0xc0] sm:$0xff]
    %v320 = vld [vmem:[#allocation5 + $0xc8] sm:$0xff]
    %v321 = vld [vmem:[#allocation5 + $0xd0] sm:$0xff]
    %v322 = vld [vmem:[#allocation5 + $0xd8] sm:$0xff]
    %v323 = vld [vmem:[#allocation5 + $0xe0] sm:$0xff]
    %v324 = vld [vmem:[#allocation5 + $0xe8] sm:$0xff]
    %v325 = vld [vmem:[#allocation5 + $0xf0] sm:$0xff]
    %v326 = vld [vmem:[#allocation5 + $0xf8] sm:$0xff]
    %s327 = scalar_lea.vmem %s4, 1
    %v328 = vld [vmem:[%s327] ss:$8 sm:$0x3]
    %v330 = vlaneseq
    %v331 = vshrl.u32 %v330, 7
    %v332 = vsub.s32 0, %v331
    %v333 = vrot.slane %v328, %v332
    %v334 = vlaneseq
    %v335 = vshrl.u32 %v334, 7
    %v336 = vsub.s32 1, %v335
    %v337 = vrot.slane %v328, %v336
    %v372 = vunpack.c.l.b16 %v295
    %v373 = vunpack.c.h.b16 %v295
    %v374 = vunpack.c.l.b16 %v296
    %v375 = vunpack.c.h.b16 %v296
    %v376 = vunpack.c.l.b16 %v297
    %v377 = vunpack.c.h.b16 %v297
    %v378 = vunpack.c.l.b16 %v298
    %v379 = vunpack.c.h.b16 %v298
    %v380 = vunpack.c.l.b16 %v299
    %v381 = vunpack.c.h.b16 %v299
    %v382 = vunpack.c.l.b16 %v300
    %v383 = vunpack.c.h.b16 %v300
    %v384 = vunpack.c.l.b16 %v301
    %v385 = vunpack.c.h.b16 %v301
    %v386 = vunpack.c.l.b16 %v302
    %v387 = vunpack.c.h.b16 %v302
    %v388 = vunpack.c.l.b16 %v303
    %v389 = vunpack.c.h.b16 %v303
    %v390 = vunpack.c.l.b16 %v304
    %v391 = vunpack.c.h.b16 %v304
    %v392 = vunpack.c.l.b16 %v305
    %v393 = vunpack.c.h.b16 %v305
    %v394 = vunpack.c.l.b16 %v306
    %v395 = vunpack.c.h.b16 %v306
    %v396 = vunpack.c.l.b16 %v307
    %v397 = vunpack.c.h.b16 %v307
    %v398 = vunpack.c.l.b16 %v308
    %v399 = vunpack.c.h.b16 %v308
    %v400 = vunpack.c.l.b16 %v309
    %v401 = vunpack.c.h.b16 %v309
    %v402 = vunpack.c.l.b16 %v310
    %v403 = vunpack.c.h.b16 %v310
    %v404 = vunpack.c.l.b16 %v311
    %v405 = vunpack.c.h.b16 %v311
    %v406 = vunpack.c.l.b16 %v312
    %v407 = vunpack.c.h.b16 %v312
    %v408 = vunpack.c.l.b16 %v313
    %v409 = vunpack.c.h.b16 %v313
    %v410 = vunpack.c.l.b16 %v314
    %v411 = vunpack.c.h.b16 %v314
    %v412 = vunpack.c.l.b16 %v315
    %v413 = vunpack.c.h.b16 %v315
    %v414 = vunpack.c.l.b16 %v316
    %v415 = vunpack.c.h.b16 %v316
    %v416 = vunpack.c.l.b16 %v317
    %v417 = vunpack.c.h.b16 %v317
    %v418 = vunpack.c.l.b16 %v318
    %v419 = vunpack.c.h.b16 %v318
    %v420 = vunpack.c.l.b16 %v319
    %v421 = vunpack.c.h.b16 %v319
    %v422 = vunpack.c.l.b16 %v320
    %v423 = vunpack.c.h.b16 %v320
    %v424 = vunpack.c.l.b16 %v321
    %v425 = vunpack.c.h.b16 %v321
    %v426 = vunpack.c.l.b16 %v322
    %v427 = vunpack.c.h.b16 %v322
    %v428 = vunpack.c.l.b16 %v323
    %v429 = vunpack.c.h.b16 %v323
    %v430 = vunpack.c.l.b16 %v324
    %v431 = vunpack.c.h.b16 %v324
    %v432 = vunpack.c.l.b16 %v325
    %v433 = vunpack.c.h.b16 %v325
    %v434 = vunpack.c.l.b16 %v326
    %v435 = vunpack.c.h.b16 %v326
    %v436 = vpack.c.b16 %v374, %v372
    %v437 = vpack.c.b16 %v375, %v373
    %v438 = vpack.c.b16 %v378, %v376
    %v439 = vpack.c.b16 %v379, %v377
    %v440 = vpack.c.b16 %v382, %v380
    %v441 = vpack.c.b16 %v383, %v381
    %v442 = vpack.c.b16 %v386, %v384
    %v443 = vpack.c.b16 %v387, %v385
    %v444 = vpack.c.b16 %v390, %v388
    %v445 = vpack.c.b16 %v391, %v389
    %v446 = vpack.c.b16 %v394, %v392
    %v447 = vpack.c.b16 %v395, %v393
    %v448 = vpack.c.b16 %v398, %v396
    %v449 = vpack.c.b16 %v399, %v397
    %v450 = vpack.c.b16 %v402, %v400
    %v451 = vpack.c.b16 %v403, %v401
    %v452 = vpack.c.b16 %v406, %v404
    %v453 = vpack.c.b16 %v407, %v405
    %v454 = vpack.c.b16 %v410, %v408
    %v455 = vpack.c.b16 %v411, %v409
    %v456 = vpack.c.b16 %v414, %v412
    %v457 = vpack.c.b16 %v415, %v413
    %v458 = vpack.c.b16 %v418, %v416
    %v459 = vpack.c.b16 %v419, %v417
    %v460 = vpack.c.b16 %v422, %v420
    %v461 = vpack.c.b16 %v423, %v421
    %v462 = vpack.c.b16 %v426, %v424
    %v463 = vpack.c.b16 %v427, %v425
    %v464 = vpack.c.b16 %v430, %v428
    %v465 = vpack.c.b16 %v431, %v429
    %v466 = vpack.c.b16 %v434, %v432
    %v467 = vpack.c.b16 %v435, %v433
    %500 = vmatprep.subr.bf16.mxu0 %v437
    %501 = vmatpush1.bf16.msra.mxu0 %v436
    %502 = vmatprep.subr.bf16.mxu0 %v439
    %503 = vmatpush1.bf16.msra.mxu0 %v438
    %504 = vmatprep.subr.bf16.mxu0 %v441
    %505 = vmatpush1.bf16.msra.mxu0 %v440
    %506 = vmatprep.subr.bf16.mxu0 %v443
    %507 = vmatpush1.bf16.msra.mxu0 %v442
    %508 = vmatprep.subr.bf16.mxu0 %v445
    %509 = vmatpush1.bf16.msra.mxu0 %v444
    %510 = vmatprep.subr.bf16.mxu0 %v447
    %511 = vmatpush1.bf16.msra.mxu0 %v446
    %512 = vmatprep.subr.bf16.mxu0 %v449
    %513 = vmatpush1.bf16.msra.mxu0 %v448
    %514 = vmatprep.subr.bf16.mxu0 %v451
    %515 = vmatpush1.bf16.msra.mxu0 %v450
    %516 = vmatprep.subr.bf16.mxu0 %v453
    %517 = vmatpush1.bf16.msra.mxu0 %v452
    %518 = vmatprep.subr.bf16.mxu0 %v455
    %519 = vmatpush1.bf16.msra.mxu0 %v454
    %520 = vmatprep.subr.bf16.mxu0 %v457
    %521 = vmatpush1.bf16.msra.mxu0 %v456
    %522 = vmatprep.subr.bf16.mxu0 %v459
    %523 = vmatpush1.bf16.msra.mxu0 %v458
    %524 = vmatprep.subr.bf16.mxu0 %v461
    %525 = vmatpush1.bf16.msra.mxu0 %v460
    %526 = vmatprep.subr.bf16.mxu0 %v463
    %527 = vmatpush1.bf16.msra.mxu0 %v462
    %528 = vmatprep.subr.bf16.mxu0 %v465
    %529 = vmatpush1.bf16.msra.mxu0 %v464
    %530 = vmatprep.subr.bf16.mxu0 %v467
    %531 = vmatpush1.bf16.msra.mxu0 %v466
    %532 = vmatprep.mubr.bf16.mxu0 %v294
    %533 = vmatmul.mubr.bf16.gmra.mrb[0].mxu0 %v293
    %v534 = vpop.f32.mrb[0].mxu0
    %v535 = vadd.f32 %v333, %v534
    %v536 = vpop.f32.mrb[0].mxu0
    %v537 = vadd.f32 %v337, %v536
    %v538 = vpop.f32.mrb[0].mxu0
    %v539 = vpop.f32.mrb[0].mxu0
    %540 = vdwg.mxu0
    %v541 = vmax.f32 %v535, 0.0
    %v542 = vmax.f32 %v537, 0.0
    %v543 = vrot.slane %v541, 4
    %v544 = vadd.f32 %v541, %v543
    %v545 = vrot.slane %v544, 2
    %v546 = vadd.f32 %v544, %v545
    %v547 = vrot.slane %v546, 1
    %v548 = vadd.f32 %v546, %v547
    %v549 = vrot.slane %v542, 4
    %v550 = vadd.f32 %v542, %v549
    %v551 = vrot.slane %v550, 2
    %v552 = vadd.f32 %v550, %v551
    %v553 = vrot.slane %v552, 1
    %v554 = vadd.f32 %v552, %v553
    %v555 = vmul.f32 %v548, 0.125
    %v556 = vmul.f32 %v554, 0.125
    %v557 = vmul.f32 %v541, %v541
    %v558 = vmul.f32 %v542, %v542
    %v559 = vrot.slane %v557, 4
    %v560 = vadd.f32 %v557, %v559
    %v561 = vrot.slane %v560, 2
    %v562 = vadd.f32 %v560, %v561
    %v563 = vrot.slane %v562, 1
    %v564 = vadd.f32 %v562, %v563
    %v565 = vrot.slane %v558, 4
    %v566 = vadd.f32 %v558, %v565
    %v567 = vrot.slane %v566, 2
    %v568 = vadd.f32 %v566, %v567
    %v569 = vrot.slane %v568, 1
    %v570 = vadd.f32 %v568, %v569
    %v571 = vmul.f32 %v564, 0.125
    %v572 = vmul.f32 %v570, 0.125
    %v573 = vmul.f32 %v555, %v555
    %v574 = vmul.f32 %v556, %v556
    %v575 = vsub.f32 %v571, %v573
    %v576 = vsub.f32 %v572, %v574
    %v577 = vmax.f32 %v575, 0.0
    %v578 = vmax.f32 %v576, 0.0
    %v579 = vadd.f32 %v577, 1e-05
    %v580 = vadd.f32 %v578, 1e-05
    %v581 = vrsqrt.pop %v579
    %v582 = vrsqrt.pop %v580
    %v583 = vsub.f32 %v541, %v555
    %v584 = vsub.f32 %v542, %v556
    %v585 = vmul.f32 %v583, %v581
    %v586 = vmul.f32 %v584, %v582
    %s587 = scalar_lea.vmem %s4, 5
    %v588 = vld [vmem:[%s587] ss:$8 sm:$0x3]
    %v590 = vlaneseq
    %v591 = vshrl.u32 %v590, 7
    %v592 = vsub.s32 0, %v591
    %v593 = vrot.slane %v588, %v592
    %v594 = vlaneseq
    %v595 = vshrl.u32 %v594, 7
    %v596 = vsub.s32 1, %v595
    %v597 = vrot.slane %v588, %v596
    %v600 = vmul.f32 %v585, %v593
    %v601 = vmul.f32 %v586, %v597
    %s602 = scalar_lea.vmem %s4, 17
    %v603 = vld [vmem:[%s602] ss:$8 sm:$0x3]
    %v605 = vlaneseq
    %v606 = vshrl.u32 %v605, 7
    %v607 = vsub.s32 0, %v606
    %v608 = vrot.slane %v603, %v607
    %v609 = vlaneseq
    %v610 = vshrl.u32 %v609, 7
    %v611 = vsub.s32 1, %v610
    %v612 = vrot.slane %v603, %v611
    %v615 = vadd.f32 %v600, %v608
    %v616 = vadd.f32 %v601, %v612
    %v617 = vpack.c.bf16 %v615, %v615
    %v618 = vpack.c.bf16 %v616, %v616
    %s619 = scalar_lea.vmem [#allocation5], 256
    %v620 = vld [vmem:[%s619] sm:$0xff]
    %v621 = vld [vmem:[%s619 + $0x8] sm:$0xff]
    %v622 = vld [vmem:[%s619 + $0x10] sm:$0xff]
    %v623 = vld [vmem:[%s619 + $0x18] sm:$0xff]
    %v624 = vld [vmem:[%s619 + $0x20] sm:$0xff]
    %v625 = vld [vmem:[%s619 + $0x28] sm:$0xff]
    %v626 = vld [vmem:[%s619 + $0x30] sm:$0xff]
    %v627 = vld [vmem:[%s619 + $0x38] sm:$0xff]
    %v628 = vld [vmem:[%s619 + $0x40] sm:$0xff]
    %v629 = vld [vmem:[%s619 + $0x48] sm:$0xff]
    %v630 = vld [vmem:[%s619 + $0x50] sm:$0xff]
    %v631 = vld [vmem:[%s619 + $0x58] sm:$0xff]
    %v632 = vld [vmem:[%s619 + $0x60] sm:$0xff]
    %v633 = vld [vmem:[%s619 + $0x68] sm:$0xff]
    %v634 = vld [vmem:[%s619 + $0x70] sm:$0xff]
    %v635 = vld [vmem:[%s619 + $0x78] sm:$0xff]
    %v636 = vld [vmem:[%s619 + $0x80] sm:$0xff]
    %v637 = vld [vmem:[%s619 + $0x88] sm:$0xff]
    %v638 = vld [vmem:[%s619 + $0x90] sm:$0xff]
    %v639 = vld [vmem:[%s619 + $0x98] sm:$0xff]
    %v640 = vld [vmem:[%s619 + $0xa0] sm:$0xff]
    %v641 = vld [vmem:[%s619 + $0xa8] sm:$0xff]
    %v642 = vld [vmem:[%s619 + $0xb0] sm:$0xff]
    %v643 = vld [vmem:[%s619 + $0xb8] sm:$0xff]
    %v644 = vld [vmem:[%s619 + $0xc0] sm:$0xff]
    %v645 = vld [vmem:[%s619 + $0xc8] sm:$0xff]
    %v646 = vld [vmem:[%s619 + $0xd0] sm:$0xff]
    %v647 = vld [vmem:[%s619 + $0xd8] sm:$0xff]
    %v648 = vld [vmem:[%s619 + $0xe0] sm:$0xff]
    %v649 = vld [vmem:[%s619 + $0xe8] sm:$0xff]
    %v650 = vld [vmem:[%s619 + $0xf0] sm:$0xff]
    %v651 = vld [vmem:[%s619 + $0xf8] sm:$0xff]
    %s652 = scalar_lea.vmem %s4, 2
    %v653 = vld [vmem:[%s652] ss:$8 sm:$0x3]
    %v655 = vlaneseq
    %v656 = vshrl.u32 %v655, 7
    %v657 = vsub.s32 0, %v656
    %v658 = vrot.slane %v653, %v657
    %v659 = vlaneseq
    %v660 = vshrl.u32 %v659, 7
    %v661 = vsub.s32 1, %v660
    %v662 = vrot.slane %v653, %v661
    %v697 = vunpack.c.l.b16 %v620
    %v698 = vunpack.c.h.b16 %v620
    %v699 = vunpack.c.l.b16 %v621
    %v700 = vunpack.c.h.b16 %v621
    %v701 = vunpack.c.l.b16 %v622
    %v702 = vunpack.c.h.b16 %v622
    %v703 = vunpack.c.l.b16 %v623
    %v704 = vunpack.c.h.b16 %v623
    %v705 = vunpack.c.l.b16 %v624
    %v706 = vunpack.c.h.b16 %v624
    %v707 = vunpack.c.l.b16 %v625
    %v708 = vunpack.c.h.b16 %v625
    %v709 = vunpack.c.l.b16 %v626
    %v710 = vunpack.c.h.b16 %v626
    %v711 = vunpack.c.l.b16 %v627
    %v712 = vunpack.c.h.b16 %v627
    %v713 = vunpack.c.l.b16 %v628
    %v714 = vunpack.c.h.b16 %v628
    %v715 = vunpack.c.l.b16 %v629
    %v716 = vunpack.c.h.b16 %v629
    %v717 = vunpack.c.l.b16 %v630
    %v718 = vunpack.c.h.b16 %v630
    %v719 = vunpack.c.l.b16 %v631
    %v720 = vunpack.c.h.b16 %v631
    %v721 = vunpack.c.l.b16 %v632
    %v722 = vunpack.c.h.b16 %v632
    %v723 = vunpack.c.l.b16 %v633
    %v724 = vunpack.c.h.b16 %v633
    %v725 = vunpack.c.l.b16 %v634
    %v726 = vunpack.c.h.b16 %v634
    %v727 = vunpack.c.l.b16 %v635
    %v728 = vunpack.c.h.b16 %v635
    %v729 = vunpack.c.l.b16 %v636
    %v730 = vunpack.c.h.b16 %v636
    %v731 = vunpack.c.l.b16 %v637
    %v732 = vunpack.c.h.b16 %v637
    %v733 = vunpack.c.l.b16 %v638
    %v734 = vunpack.c.h.b16 %v638
    %v735 = vunpack.c.l.b16 %v639
    %v736 = vunpack.c.h.b16 %v639
    %v737 = vunpack.c.l.b16 %v640
    %v738 = vunpack.c.h.b16 %v640
    %v739 = vunpack.c.l.b16 %v641
    %v740 = vunpack.c.h.b16 %v641
    %v741 = vunpack.c.l.b16 %v642
    %v742 = vunpack.c.h.b16 %v642
    %v743 = vunpack.c.l.b16 %v643
    %v744 = vunpack.c.h.b16 %v643
    %v745 = vunpack.c.l.b16 %v644
    %v746 = vunpack.c.h.b16 %v644
    %v747 = vunpack.c.l.b16 %v645
    %v748 = vunpack.c.h.b16 %v645
    %v749 = vunpack.c.l.b16 %v646
    %v750 = vunpack.c.h.b16 %v646
    %v751 = vunpack.c.l.b16 %v647
    %v752 = vunpack.c.h.b16 %v647
    %v753 = vunpack.c.l.b16 %v648
    %v754 = vunpack.c.h.b16 %v648
    %v755 = vunpack.c.l.b16 %v649
    %v756 = vunpack.c.h.b16 %v649
    %v757 = vunpack.c.l.b16 %v650
    %v758 = vunpack.c.h.b16 %v650
    %v759 = vunpack.c.l.b16 %v651
    %v760 = vunpack.c.h.b16 %v651
    %v761 = vpack.c.b16 %v699, %v697
    %v762 = vpack.c.b16 %v700, %v698
    %v763 = vpack.c.b16 %v703, %v701
    %v764 = vpack.c.b16 %v704, %v702
    %v765 = vpack.c.b16 %v707, %v705
    %v766 = vpack.c.b16 %v708, %v706
    %v767 = vpack.c.b16 %v711, %v709
    %v768 = vpack.c.b16 %v712, %v710
    %v769 = vpack.c.b16 %v715, %v713
    %v770 = vpack.c.b16 %v716, %v714
    %v771 = vpack.c.b16 %v719, %v717
    %v772 = vpack.c.b16 %v720, %v718
    %v773 = vpack.c.b16 %v723, %v721
    %v774 = vpack.c.b16 %v724, %v722
    %v775 = vpack.c.b16 %v727, %v725
    %v776 = vpack.c.b16 %v728, %v726
    %v777 = vpack.c.b16 %v731, %v729
    %v778 = vpack.c.b16 %v732, %v730
    %v779 = vpack.c.b16 %v735, %v733
    %v780 = vpack.c.b16 %v736, %v734
    %v781 = vpack.c.b16 %v739, %v737
    %v782 = vpack.c.b16 %v740, %v738
    %v783 = vpack.c.b16 %v743, %v741
    %v784 = vpack.c.b16 %v744, %v742
    %v785 = vpack.c.b16 %v747, %v745
    %v786 = vpack.c.b16 %v748, %v746
    %v787 = vpack.c.b16 %v751, %v749
    %v788 = vpack.c.b16 %v752, %v750
    %v789 = vpack.c.b16 %v755, %v753
    %v790 = vpack.c.b16 %v756, %v754
    %v791 = vpack.c.b16 %v759, %v757
    %v792 = vpack.c.b16 %v760, %v758
    %825 = vmatprep.subr.bf16.mxu0 %v762
    %826 = vmatpush1.bf16.msra.mxu0 %v761
    %827 = vmatprep.subr.bf16.mxu0 %v764
    %828 = vmatpush1.bf16.msra.mxu0 %v763
    %829 = vmatprep.subr.bf16.mxu0 %v766
    %830 = vmatpush1.bf16.msra.mxu0 %v765
    %831 = vmatprep.subr.bf16.mxu0 %v768
    %832 = vmatpush1.bf16.msra.mxu0 %v767
    %833 = vmatprep.subr.bf16.mxu0 %v770
    %834 = vmatpush1.bf16.msra.mxu0 %v769
    %835 = vmatprep.subr.bf16.mxu0 %v772
    %836 = vmatpush1.bf16.msra.mxu0 %v771
    %837 = vmatprep.subr.bf16.mxu0 %v774
    %838 = vmatpush1.bf16.msra.mxu0 %v773
    %839 = vmatprep.subr.bf16.mxu0 %v776
    %840 = vmatpush1.bf16.msra.mxu0 %v775
    %841 = vmatprep.subr.bf16.mxu0 %v778
    %842 = vmatpush1.bf16.msra.mxu0 %v777
    %843 = vmatprep.subr.bf16.mxu0 %v780
    %844 = vmatpush1.bf16.msra.mxu0 %v779
    %845 = vmatprep.subr.bf16.mxu0 %v782
    %846 = vmatpush1.bf16.msra.mxu0 %v781
    %847 = vmatprep.subr.bf16.mxu0 %v784
    %848 = vmatpush1.bf16.msra.mxu0 %v783
    %849 = vmatprep.subr.bf16.mxu0 %v786
    %850 = vmatpush1.bf16.msra.mxu0 %v785
    %851 = vmatprep.subr.bf16.mxu0 %v788
    %852 = vmatpush1.bf16.msra.mxu0 %v787
    %853 = vmatprep.subr.bf16.mxu0 %v790
    %854 = vmatpush1.bf16.msra.mxu0 %v789
    %855 = vmatprep.subr.bf16.mxu0 %v792
    %856 = vmatpush1.bf16.msra.mxu0 %v791
    %857 = vmatprep.mubr.bf16.mxu0 %v618
    %858 = vmatmul.mubr.bf16.gmra.mrb[0].mxu0 %v617
    %v859 = vpop.f32.mrb[0].mxu0
    %v860 = vadd.f32 %v658, %v859
    %v861 = vpop.f32.mrb[0].mxu0
    %v862 = vadd.f32 %v662, %v861
    %v863 = vpop.f32.mrb[0].mxu0
    %v864 = vpop.f32.mrb[0].mxu0
    %865 = vdwg.mxu0
    %v866 = vmax.f32 %v860, 0.0
    %v867 = vmax.f32 %v862, 0.0
    %v868 = vrot.slane %v866, 4
    %v869 = vadd.f32 %v866, %v868
    %v870 = vrot.slane %v869, 2
    %v871 = vadd.f32 %v869, %v870
    %v872 = vrot.slane %v871, 1
    %v873 = vadd.f32 %v871, %v872
    %v874 = vrot.slane %v867, 4
    %v875 = vadd.f32 %v867, %v874
    %v876 = vrot.slane %v875, 2
    %v877 = vadd.f32 %v875, %v876
    %v878 = vrot.slane %v877, 1
    %v879 = vadd.f32 %v877, %v878
    %v880 = vmul.f32 %v873, 0.125
    %v881 = vmul.f32 %v879, 0.125
    %v882 = vmul.f32 %v866, %v866
    %v883 = vmul.f32 %v867, %v867
    %v884 = vrot.slane %v882, 4
    %v885 = vadd.f32 %v882, %v884
    %v886 = vrot.slane %v885, 2
    %v887 = vadd.f32 %v885, %v886
    %v888 = vrot.slane %v887, 1
    %v889 = vadd.f32 %v887, %v888
    %v890 = vrot.slane %v883, 4
    %v891 = vadd.f32 %v883, %v890
    %v892 = vrot.slane %v891, 2
    %v893 = vadd.f32 %v891, %v892
    %v894 = vrot.slane %v893, 1
    %v895 = vadd.f32 %v893, %v894
    %v896 = vmul.f32 %v889, 0.125
    %v897 = vmul.f32 %v895, 0.125
    %v898 = vmul.f32 %v880, %v880
    %v899 = vmul.f32 %v881, %v881
    %v900 = vsub.f32 %v896, %v898
    %v901 = vsub.f32 %v897, %v899
    %v902 = vmax.f32 %v900, 0.0
    %v903 = vmax.f32 %v901, 0.0
    %v904 = vadd.f32 %v902, 1e-05
    %v905 = vadd.f32 %v903, 1e-05
    %v906 = vrsqrt.pop %v904
    %v907 = vrsqrt.pop %v905
    %v908 = vsub.f32 %v866, %v880
    %v909 = vsub.f32 %v867, %v881
    %v910 = vmul.f32 %v908, %v906
    %v911 = vmul.f32 %v909, %v907
    %s912 = scalar_lea.vmem %s4, 6
    %v913 = vld [vmem:[%s912] ss:$8 sm:$0x3]
    %v915 = vlaneseq
    %v916 = vshrl.u32 %v915, 7
    %v917 = vsub.s32 0, %v916
    %v918 = vrot.slane %v913, %v917
    %v919 = vlaneseq
    %v920 = vshrl.u32 %v919, 7
    %v921 = vsub.s32 1, %v920
    %v922 = vrot.slane %v913, %v921
    %v925 = vmul.f32 %v910, %v918
    %v926 = vmul.f32 %v911, %v922
    %s927 = scalar_lea.vmem %s4, 18
    %v928 = vld [vmem:[%s927] ss:$8 sm:$0x3]
    %v930 = vlaneseq
    %v931 = vshrl.u32 %v930, 7
    %v932 = vsub.s32 0, %v931
    %v933 = vrot.slane %v928, %v932
    %v934 = vlaneseq
    %v935 = vshrl.u32 %v934, 7
    %v936 = vsub.s32 1, %v935
    %v937 = vrot.slane %v928, %v936
    %v940 = vadd.f32 %v925, %v933
    %v941 = vadd.f32 %v926, %v937
    %v942 = vpack.c.bf16 %v940, %v940
    %v943 = vpack.c.bf16 %v941, %v941
    %s944 = scalar_lea.vmem [#allocation5], 512
    %v945 = vld [vmem:[%s944] sm:$0xff]
    %v946 = vld [vmem:[%s944 + $0x8] sm:$0xff]
    %v947 = vld [vmem:[%s944 + $0x10] sm:$0xff]
    %v948 = vld [vmem:[%s944 + $0x18] sm:$0xff]
    %v949 = vld [vmem:[%s944 + $0x20] sm:$0xff]
    %v950 = vld [vmem:[%s944 + $0x28] sm:$0xff]
    %v951 = vld [vmem:[%s944 + $0x30] sm:$0xff]
    %v952 = vld [vmem:[%s944 + $0x38] sm:$0xff]
    %v953 = vld [vmem:[%s944 + $0x40] sm:$0xff]
    %v954 = vld [vmem:[%s944 + $0x48] sm:$0xff]
    %v955 = vld [vmem:[%s944 + $0x50] sm:$0xff]
    %v956 = vld [vmem:[%s944 + $0x58] sm:$0xff]
    %v957 = vld [vmem:[%s944 + $0x60] sm:$0xff]
    %v958 = vld [vmem:[%s944 + $0x68] sm:$0xff]
    %v959 = vld [vmem:[%s944 + $0x70] sm:$0xff]
    %v960 = vld [vmem:[%s944 + $0x78] sm:$0xff]
    %v961 = vld [vmem:[%s944 + $0x80] sm:$0xff]
    %v962 = vld [vmem:[%s944 + $0x88] sm:$0xff]
    %v963 = vld [vmem:[%s944 + $0x90] sm:$0xff]
    %v964 = vld [vmem:[%s944 + $0x98] sm:$0xff]
    %v965 = vld [vmem:[%s944 + $0xa0] sm:$0xff]
    %v966 = vld [vmem:[%s944 + $0xa8] sm:$0xff]
    %v967 = vld [vmem:[%s944 + $0xb0] sm:$0xff]
    %v968 = vld [vmem:[%s944 + $0xb8] sm:$0xff]
    %v969 = vld [vmem:[%s944 + $0xc0] sm:$0xff]
    %v970 = vld [vmem:[%s944 + $0xc8] sm:$0xff]
    %v971 = vld [vmem:[%s944 + $0xd0] sm:$0xff]
    %v972 = vld [vmem:[%s944 + $0xd8] sm:$0xff]
    %v973 = vld [vmem:[%s944 + $0xe0] sm:$0xff]
    %v974 = vld [vmem:[%s944 + $0xe8] sm:$0xff]
    %v975 = vld [vmem:[%s944 + $0xf0] sm:$0xff]
    %v976 = vld [vmem:[%s944 + $0xf8] sm:$0xff]
    %s977 = scalar_lea.vmem %s4, 3
    %v978 = vld [vmem:[%s977] ss:$8 sm:$0x3]
    %v980 = vlaneseq
    %v981 = vshrl.u32 %v980, 7
    %v982 = vsub.s32 0, %v981
    %v983 = vrot.slane %v978, %v982
    %v984 = vlaneseq
    %v985 = vshrl.u32 %v984, 7
    %v986 = vsub.s32 1, %v985
    %v987 = vrot.slane %v978, %v986
    %v1022 = vunpack.c.l.b16 %v945
    %v1023 = vunpack.c.h.b16 %v945
    %v1024 = vunpack.c.l.b16 %v946
    %v1025 = vunpack.c.h.b16 %v946
    %v1026 = vunpack.c.l.b16 %v947
    %v1027 = vunpack.c.h.b16 %v947
    %v1028 = vunpack.c.l.b16 %v948
    %v1029 = vunpack.c.h.b16 %v948
    %v1030 = vunpack.c.l.b16 %v949
    %v1031 = vunpack.c.h.b16 %v949
    %v1032 = vunpack.c.l.b16 %v950
    %v1033 = vunpack.c.h.b16 %v950
    %v1034 = vunpack.c.l.b16 %v951
    %v1035 = vunpack.c.h.b16 %v951
    %v1036 = vunpack.c.l.b16 %v952
    %v1037 = vunpack.c.h.b16 %v952
    %v1038 = vunpack.c.l.b16 %v953
    %v1039 = vunpack.c.h.b16 %v953
    %v1040 = vunpack.c.l.b16 %v954
    %v1041 = vunpack.c.h.b16 %v954
    %v1042 = vunpack.c.l.b16 %v955
    %v1043 = vunpack.c.h.b16 %v955
    %v1044 = vunpack.c.l.b16 %v956
    %v1045 = vunpack.c.h.b16 %v956
    %v1046 = vunpack.c.l.b16 %v957
    %v1047 = vunpack.c.h.b16 %v957
    %v1048 = vunpack.c.l.b16 %v958
    %v1049 = vunpack.c.h.b16 %v958
    %v1050 = vunpack.c.l.b16 %v959
    %v1051 = vunpack.c.h.b16 %v959
    %v1052 = vunpack.c.l.b16 %v960
    %v1053 = vunpack.c.h.b16 %v960
    %v1054 = vunpack.c.l.b16 %v961
    %v1055 = vunpack.c.h.b16 %v961
    %v1056 = vunpack.c.l.b16 %v962
    %v1057 = vunpack.c.h.b16 %v962
    %v1058 = vunpack.c.l.b16 %v963
    %v1059 = vunpack.c.h.b16 %v963
    %v1060 = vunpack.c.l.b16 %v964
    %v1061 = vunpack.c.h.b16 %v964
    %v1062 = vunpack.c.l.b16 %v965
    %v1063 = vunpack.c.h.b16 %v965
    %v1064 = vunpack.c.l.b16 %v966
    %v1065 = vunpack.c.h.b16 %v966
    %v1066 = vunpack.c.l.b16 %v967
    %v1067 = vunpack.c.h.b16 %v967
    %v1068 = vunpack.c.l.b16 %v968
    %v1069 = vunpack.c.h.b16 %v968
    %v1070 = vunpack.c.l.b16 %v969
    %v1071 = vunpack.c.h.b16 %v969
    %v1072 = vunpack.c.l.b16 %v970
    %v1073 = vunpack.c.h.b16 %v970
    %v1074 = vunpack.c.l.b16 %v971
    %v1075 = vunpack.c.h.b16 %v971
    %v1076 = vunpack.c.l.b16 %v972
    %v1077 = vunpack.c.h.b16 %v972
    %v1078 = vunpack.c.l.b16 %v973
    %v1079 = vunpack.c.h.b16 %v973
    %v1080 = vunpack.c.l.b16 %v974
    %v1081 = vunpack.c.h.b16 %v974
    %v1082 = vunpack.c.l.b16 %v975
    %v1083 = vunpack.c.h.b16 %v975
    %v1084 = vunpack.c.l.b16 %v976
    %v1085 = vunpack.c.h.b16 %v976
    %v1086 = vpack.c.b16 %v1024, %v1022
    %v1087 = vpack.c.b16 %v1025, %v1023
    %v1088 = vpack.c.b16 %v1028, %v1026
    %v1089 = vpack.c.b16 %v1029, %v1027
    %v1090 = vpack.c.b16 %v1032, %v1030
    %v1091 = vpack.c.b16 %v1033, %v1031
    %v1092 = vpack.c.b16 %v1036, %v1034
    %v1093 = vpack.c.b16 %v1037, %v1035
    %v1094 = vpack.c.b16 %v1040, %v1038
    %v1095 = vpack.c.b16 %v1041, %v1039
    %v1096 = vpack.c.b16 %v1044, %v1042
    %v1097 = vpack.c.b16 %v1045, %v1043
    %v1098 = vpack.c.b16 %v1048, %v1046
    %v1099 = vpack.c.b16 %v1049, %v1047
    %v1100 = vpack.c.b16 %v1052, %v1050
    %v1101 = vpack.c.b16 %v1053, %v1051
    %v1102 = vpack.c.b16 %v1056, %v1054
    %v1103 = vpack.c.b16 %v1057, %v1055
    %v1104 = vpack.c.b16 %v1060, %v1058
    %v1105 = vpack.c.b16 %v1061, %v1059
    %v1106 = vpack.c.b16 %v1064, %v1062
    %v1107 = vpack.c.b16 %v1065, %v1063
    %v1108 = vpack.c.b16 %v1068, %v1066
    %v1109 = vpack.c.b16 %v1069, %v1067
    %v1110 = vpack.c.b16 %v1072, %v1070
    %v1111 = vpack.c.b16 %v1073, %v1071
    %v1112 = vpack.c.b16 %v1076, %v1074
    %v1113 = vpack.c.b16 %v1077, %v1075
    %v1114 = vpack.c.b16 %v1080, %v1078
    %v1115 = vpack.c.b16 %v1081, %v1079
    %v1116 = vpack.c.b16 %v1084, %v1082
    %v1117 = vpack.c.b16 %v1085, %v1083
    %1150 = vmatprep.subr.bf16.mxu0 %v1087
    %1151 = vmatpush1.bf16.msra.mxu0 %v1086
    %1152 = vmatprep.subr.bf16.mxu0 %v1089
    %1153 = vmatpush1.bf16.msra.mxu0 %v1088
    %1154 = vmatprep.subr.bf16.mxu0 %v1091
    %1155 = vmatpush1.bf16.msra.mxu0 %v1090
    %1156 = vmatprep.subr.bf16.mxu0 %v1093
    %1157 = vmatpush1.bf16.msra.mxu0 %v1092
    %1158 = vmatprep.subr.bf16.mxu0 %v1095
    %1159 = vmatpush1.bf16.msra.mxu0 %v1094
    %1160 = vmatprep.subr.bf16.mxu0 %v1097
    %1161 = vmatpush1.bf16.msra.mxu0 %v1096
    %1162 = vmatprep.subr.bf16.mxu0 %v1099
    %1163 = vmatpush1.bf16.msra.mxu0 %v1098
    %1164 = vmatprep.subr.bf16.mxu0 %v1101
    %1165 = vmatpush1.bf16.msra.mxu0 %v1100
    %1166 = vmatprep.subr.bf16.mxu0 %v1103
    %1167 = vmatpush1.bf16.msra.mxu0 %v1102
    %1168 = vmatprep.subr.bf16.mxu0 %v1105
    %1169 = vmatpush1.bf16.msra.mxu0 %v1104
    %1170 = vmatprep.subr.bf16.mxu0 %v1107
    %1171 = vmatpush1.bf16.msra.mxu0 %v1106
    %1172 = vmatprep.subr.bf16.mxu0 %v1109
    %1173 = vmatpush1.bf16.msra.mxu0 %v1108
    %1174 = vmatprep.subr.bf16.mxu0 %v1111
    %1175 = vmatpush1.bf16.msra.mxu0 %v1110
    %1176 = vmatprep.subr.bf16.mxu0 %v1113
    %1177 = vmatpush1.bf16.msra.mxu0 %v1112
    %1178 = vmatprep.subr.bf16.mxu0 %v1115
    %1179 = vmatpush1.bf16.msra.mxu0 %v1114
    %1180 = vmatprep.subr.bf16.mxu0 %v1117
    %1181 = vmatpush1.bf16.msra.mxu0 %v1116
    %1182 = vmatprep.mubr.bf16.mxu0 %v943
    %1183 = vmatmul.mubr.bf16.gmra.mrb[0].mxu0 %v942
    %v1184 = vpop.f32.mrb[0].mxu0
    %v1185 = vadd.f32 %v983, %v1184
    %v1186 = vpop.f32.mrb[0].mxu0
    %v1187 = vadd.f32 %v987, %v1186
    %v1188 = vpop.f32.mrb[0].mxu0
    %v1189 = vpop.f32.mrb[0].mxu0
    %1190 = vdwg.mxu0
    %v1191 = vmax.f32 %v1185, 0.0
    %v1192 = vmax.f32 %v1187, 0.0
    %v1193 = vrot.slane %v1191, 4
    %v1194 = vadd.f32 %v1191, %v1193
    %v1195 = vrot.slane %v1194, 2
    %v1196 = vadd.f32 %v1194, %v1195
    %v1197 = vrot.slane %v1196, 1
    %v1198 = vadd.f32 %v1196, %v1197
    %v1199 = vrot.slane %v1192, 4
    %v1200 = vadd.f32 %v1192, %v1199
    %v1201 = vrot.slane %v1200, 2
    %v1202 = vadd.f32 %v1200, %v1201
    %v1203 = vrot.slane %v1202, 1
    %v1204 = vadd.f32 %v1202, %v1203
    %v1205 = vmul.f32 %v1198, 0.125
    %v1206 = vmul.f32 %v1204, 0.125
    %v1207 = vmul.f32 %v1191, %v1191
    %v1208 = vmul.f32 %v1192, %v1192
    %v1209 = vrot.slane %v1207, 4
    %v1210 = vadd.f32 %v1207, %v1209
    %v1211 = vrot.slane %v1210, 2
    %v1212 = vadd.f32 %v1210, %v1211
    %v1213 = vrot.slane %v1212, 1
    %v1214 = vadd.f32 %v1212, %v1213
    %v1215 = vrot.slane %v1208, 4
    %v1216 = vadd.f32 %v1208, %v1215
    %v1217 = vrot.slane %v1216, 2
    %v1218 = vadd.f32 %v1216, %v1217
    %v1219 = vrot.slane %v1218, 1
    %v1220 = vadd.f32 %v1218, %v1219
    %v1221 = vmul.f32 %v1214, 0.125
    %v1222 = vmul.f32 %v1220, 0.125
    %v1223 = vmul.f32 %v1205, %v1205
    %v1224 = vmul.f32 %v1206, %v1206
    %v1225 = vsub.f32 %v1221, %v1223
    %v1226 = vsub.f32 %v1222, %v1224
    %v1227 = vmax.f32 %v1225, 0.0
    %v1228 = vmax.f32 %v1226, 0.0
    %v1229 = vadd.f32 %v1227, 1e-05
    %v1230 = vadd.f32 %v1228, 1e-05
    %v1231 = vrsqrt.pop %v1229
    %v1232 = vrsqrt.pop %v1230
    %v1233 = vsub.f32 %v1191, %v1205
    %v1234 = vsub.f32 %v1192, %v1206
    %v1235 = vmul.f32 %v1233, %v1231
    %v1236 = vmul.f32 %v1234, %v1232
    %s1237 = scalar_lea.vmem %s4, 7
    %v1238 = vld [vmem:[%s1237] ss:$8 sm:$0x3]
    %v1240 = vlaneseq
    %v1241 = vshrl.u32 %v1240, 7
    %v1242 = vsub.s32 0, %v1241
    %v1243 = vrot.slane %v1238, %v1242
    %v1244 = vlaneseq
    %v1245 = vshrl.u32 %v1244, 7
    %v1246 = vsub.s32 1, %v1245
    %v1247 = vrot.slane %v1238, %v1246
    %v1250 = vmul.f32 %v1235, %v1243
    %v1251 = vmul.f32 %v1236, %v1247
    %s1252 = scalar_lea.vmem %s4, 19
    %v1253 = vld [vmem:[%s1252] ss:$8 sm:$0x3]
    %v1255 = vlaneseq
    %v1256 = vshrl.u32 %v1255, 7
    %v1257 = vsub.s32 0, %v1256
    %v1258 = vrot.slane %v1253, %v1257
    %v1259 = vlaneseq
    %v1260 = vshrl.u32 %v1259, 7
    %v1261 = vsub.s32 1, %v1260
    %v1262 = vrot.slane %v1253, %v1261
    %v1265 = vadd.f32 %v1250, %v1258
    %v1266 = vadd.f32 %v1251, %v1262
    %v1267 = vpack.c.bf16 %v1265, %v1265
    %v1268 = vpack.c.bf16 %v1266, %v1266
    %v1269 = vld [vmem:[#allocation7] sm:$0xf]
    %v1270 = vld [vmem:[#allocation7 + $0x4] sm:$0xf]
    %v1271 = vld [vmem:[#allocation7 + $0x8] sm:$0xf]
    %v1272 = vld [vmem:[#allocation7 + $0xc] sm:$0xf]
    %v1273 = vld [vmem:[#allocation7 + $0x10] sm:$0xf]
    %v1274 = vld [vmem:[#allocation7 + $0x14] sm:$0xf]
    %v1275 = vld [vmem:[#allocation7 + $0x18] sm:$0xf]
    %v1276 = vld [vmem:[#allocation7 + $0x1c] sm:$0xf]
    %v1277 = vld [vmem:[#allocation7 + $0x20] sm:$0xf]
    %v1278 = vld [vmem:[#allocation7 + $0x24] sm:$0xf]
    %v1279 = vld [vmem:[#allocation7 + $0x28] sm:$0xf]
    %v1280 = vld [vmem:[#allocation7 + $0x2c] sm:$0xf]
    %v1281 = vld [vmem:[#allocation7 + $0x30] sm:$0xf]
    %v1282 = vld [vmem:[#allocation7 + $0x34] sm:$0xf]
    %v1283 = vld [vmem:[#allocation7 + $0x38] sm:$0xf]
    %v1284 = vld [vmem:[#allocation7 + $0x3c] sm:$0xf]
    %v1285 = vld [vmem:[#allocation7 + $0x40] sm:$0xf]
    %v1286 = vld [vmem:[#allocation7 + $0x44] sm:$0xf]
    %v1287 = vld [vmem:[#allocation7 + $0x48] sm:$0xf]
    %v1288 = vld [vmem:[#allocation7 + $0x4c] sm:$0xf]
    %v1289 = vld [vmem:[#allocation7 + $0x50] sm:$0xf]
    %v1290 = vld [vmem:[#allocation7 + $0x54] sm:$0xf]
    %v1291 = vld [vmem:[#allocation7 + $0x58] sm:$0xf]
    %v1292 = vld [vmem:[#allocation7 + $0x5c] sm:$0xf]
    %v1293 = vld [vmem:[#allocation7 + $0x60] sm:$0xf]
    %v1294 = vld [vmem:[#allocation7 + $0x64] sm:$0xf]
    %v1295 = vld [vmem:[#allocation7 + $0x68] sm:$0xf]
    %v1296 = vld [vmem:[#allocation7 + $0x6c] sm:$0xf]
    %v1297 = vld [vmem:[#allocation7 + $0x70] sm:$0xf]
    %v1298 = vld [vmem:[#allocation7 + $0x74] sm:$0xf]
    %v1299 = vld [vmem:[#allocation7 + $0x78] sm:$0xf]
    %v1300 = vld [vmem:[#allocation7 + $0x7c] sm:$0xf]
    %v1301 = vld [vmem:[%s5] sm:$0x1]
    %v1303 = vlaneseq
    %v1304 = vshrl.u32 %v1303, 7
    %v1305 = vsub.s32 0, %v1304
    %v1306 = vrot.slane %v1301, %v1305
    %v1340 = vunpack.c.l.b16 %v1269
    %v1341 = vunpack.c.l.b16 %v1270
    %v1342 = vunpack.c.l.b16 %v1271
    %v1343 = vunpack.c.l.b16 %v1272
    %v1344 = vunpack.c.l.b16 %v1273
    %v1345 = vunpack.c.l.b16 %v1274
    %v1346 = vunpack.c.l.b16 %v1275
    %v1347 = vunpack.c.l.b16 %v1276
    %v1348 = vunpack.c.l.b16 %v1277
    %v1349 = vunpack.c.l.b16 %v1278
    %v1350 = vunpack.c.l.b16 %v1279
    %v1351 = vunpack.c.l.b16 %v1280
    %v1352 = vunpack.c.l.b16 %v1281
    %v1353 = vunpack.c.l.b16 %v1282
    %v1354 = vunpack.c.l.b16 %v1283
    %v1355 = vunpack.c.l.b16 %v1284
    %v1356 = vunpack.c.l.b16 %v1285
    %v1357 = vunpack.c.l.b16 %v1286
    %v1358 = vunpack.c.l.b16 %v1287
    %v1359 = vunpack.c.l.b16 %v1288
    %v1360 = vunpack.c.l.b16 %v1289
    %v1361 = vunpack.c.l.b16 %v1290
    %v1362 = vunpack.c.l.b16 %v1291
    %v1363 = vunpack.c.l.b16 %v1292
    %v1364 = vunpack.c.l.b16 %v1293
    %v1365 = vunpack.c.l.b16 %v1294
    %v1366 = vunpack.c.l.b16 %v1295
    %v1367 = vunpack.c.l.b16 %v1296
    %v1368 = vunpack.c.l.b16 %v1297
    %v1369 = vunpack.c.l.b16 %v1298
    %v1370 = vunpack.c.l.b16 %v1299
    %v1371 = vunpack.c.l.b16 %v1300
    %v1372 = vpack.c.b16 %v1341, %v1340
    %v1373 = vpack.c.b16 %v1343, %v1342
    %v1374 = vpack.c.b16 %v1345, %v1344
    %v1375 = vpack.c.b16 %v1347, %v1346
    %v1376 = vpack.c.b16 %v1349, %v1348
    %v1377 = vpack.c.b16 %v1351, %v1350
    %v1378 = vpack.c.b16 %v1353, %v1352
    %v1379 = vpack.c.b16 %v1355, %v1354
    %v1380 = vpack.c.b16 %v1357, %v1356
    %v1381 = vpack.c.b16 %v1359, %v1358
    %v1382 = vpack.c.b16 %v1361, %v1360
    %v1383 = vpack.c.b16 %v1363, %v1362
    %v1384 = vpack.c.b16 %v1365, %v1364
    %v1385 = vpack.c.b16 %v1367, %v1366
    %v1386 = vpack.c.b16 %v1369, %v1368
    %v1387 = vpack.c.b16 %v1371, %v1370
    %1404 = vmatprep.subr.bf16.mxu0 0
    %1405 = vmatpush1.bf16.msra.mxu0 %v1372
    %1406 = vmatprep.subr.bf16.mxu0 0
    %1407 = vmatpush1.bf16.msra.mxu0 %v1373
    %1408 = vmatprep.subr.bf16.mxu0 0
    %1409 = vmatpush1.bf16.msra.mxu0 %v1374
    %1410 = vmatprep.subr.bf16.mxu0 0
    %1411 = vmatpush1.bf16.msra.mxu0 %v1375
    %1412 = vmatprep.subr.bf16.mxu0 0
    %1413 = vmatpush1.bf16.msra.mxu0 %v1376
    %1414 = vmatprep.subr.bf16.mxu0 0
    %1415 = vmatpush1.bf16.msra.mxu0 %v1377
    %1416 = vmatprep.subr.bf16.mxu0 0
    %1417 = vmatpush1.bf16.msra.mxu0 %v1378
    %1418 = vmatprep.subr.bf16.mxu0 0
    %1419 = vmatpush1.bf16.msra.mxu0 %v1379
    %1420 = vmatprep.subr.bf16.mxu0 0
    %1421 = vmatpush1.bf16.msra.mxu0 %v1380
    %1422 = vmatprep.subr.bf16.mxu0 0
    %1423 = vmatpush1.bf16.msra.mxu0 %v1381
    %1424 = vmatprep.subr.bf16.mxu0 0
    %1425 = vmatpush1.bf16.msra.mxu0 %v1382
    %1426 = vmatprep.subr.bf16.mxu0 0
    %1427 = vmatpush1.bf16.msra.mxu0 %v1383
    %1428 = vmatprep.subr.bf16.mxu0 0
    %1429 = vmatpush1.bf16.msra.mxu0 %v1384
    %1430 = vmatprep.subr.bf16.mxu0 0
    %1431 = vmatpush1.bf16.msra.mxu0 %v1385
    %1432 = vmatprep.subr.bf16.mxu0 0
    %1433 = vmatpush1.bf16.msra.mxu0 %v1386
    %1434 = vmatprep.subr.bf16.mxu0 0
    %1435 = vmatpush1.bf16.msra.mxu0 %v1387
    %1436 = vmatprep.mubr.bf16.mxu0 %v1268
    %1437 = vmatmul.mubr.bf16.gmra.mrb[0].mxu0 %v1267
    %v1438 = vpop.f32.mrb[0].mxu0
    %v1439 = vadd.f32 %v1306, %v1438
    %v1440 = vpop.f32.mrb[0].mxu0
    %v1441 = vpop.f32.mrb[0].mxu0
    %v1442 = vpop.f32.mrb[0].mxu0
    %1443 = vdwg.mxu0
    %1444 = vst [vmem:[#allocation8] sm:$0xff] %v1439
    // Predicated region
    $region38: #{net_ann5_forward.1} parent=1 // pred_check
      _
    $region39: #{net_ann5_forward.1} parent=1 // pred_check_branch
      %1446 = sbr.rel (0) target = $region41
    $region40: #{net_ann5_forward.1} parent=1 // pred_region
      %s1448 = ssub.s32 128, 128
      %1449 = vsyncadd [#allocation4], %s1448
      %s1451 = sshll.u32 [#allocation8], 4
      %s1452 = int_to_ptr.vmem [resolvable:$true] %s1451
      %1454 = dma.vmem_to_hbm [thread:$0]  %s1452, 128, %s6, [#allocation4]
    $region41: #{net_ann5_forward.1} parent=1 // pred_fallthru
      _
    // Predicated region
    $region42: #{net_ann5_forward.1} parent=1 // pred_check
      _
    $region43: #{net_ann5_forward.1} parent=1 // pred_check_branch
      %1456 = sbr.rel (0) target = $region45
    $region44: #{net_ann5_forward.1} parent=1 // pred_region
      %1457 = dma.done [#allocation4], 128
    $region45: #{net_ann5_forward.1} parent=1 // pred_fallthru
      _
    %1458 = vsyncpa [#allocation3], 1
    %1459 = vsyncpa [#allocation6], 1
    %1460 = vsyncpa [#allocation4], 1

</llo_original>
